<compile_context>
chip_gen: v5e
topology: v5e:2x2
jax: 0.10.0
libtpu: 0.0.40
codegen_flags: <defaults>
</compile_context>

<pallas_src>
import jax
import jax.numpy as jnp
from jax.experimental import pallas as pl
from jax.experimental.pallas import tpu as pltpu


def _make_kernel(H, W, C, pad_base, pad_len):
    HW = H * W

    def kernel(x_ref, w1_ref, b1_ref, w2_ref, b2_ref,
               f1w_ref, f1b_ref, f2w_ref, f2b_ref, o_ref, pad_ref):
        x = x_ref[0]                                       # (C, HW) f32, lane-dense

        # column index of every flattened spatial position (for left/right edge masks)
        lane = jax.lax.broadcasted_iota(jnp.int32, (1, HW), 1)
        if (W & (W - 1)) == 0:
            col = jnp.bitwise_and(lane, W - 1)
        else:
            col = lane % W
        ok_left = col >= 1                                 # valid when sampling x-1
        ok_right = col <= W - 2                            # valid when sampling x+1

        # Persistent padded scratch: zero once; borders stay zero for BOTH convs,
        # only the interior [pad_base, pad_base+HW) is rewritten per conv.
        pad_ref[...] = jnp.zeros((C, pad_len), jnp.float32)

        def conv3x3_bn(inp, w_ref, b_ref):
            # interior store is lane-tile aligned (pad_base is a multiple of 128)
            pad_ref[:, pad_base:pad_base + HW] = inp
            patches = []
            for t in range(9):
                dy, dx = divmod(t, 3)
                start = pad_base + (dy - 1) * W + (dx - 1)
                p = pad_ref[:, start:start + HW]           # shifted (Cin, HW) window
                if dx == 0:                                # sampling x-1: mask col 0
                    p = jnp.where(ok_left, p, 0.0)
                elif dx == 2:                              # sampling x+1: mask col W-1
                    p = jnp.where(ok_right, p, 0.0)
                patches.append(p)
            pmat = jnp.concatenate(patches, axis=0)        # (9*Cin, HW), sublane-aligned
            # one MXU matmul per conv; BN scale folded into w, BN bias added here
            return jnp.dot(w_ref[...], pmat,
                           preferred_element_type=jnp.float32) + b_ref[...]

        out = jnp.maximum(conv3x3_bn(x, w1_ref, b1_ref), 0.0)     # conv1 + bn1 + relu
        out = conv3x3_bn(out, w2_ref, b2_ref)                      # conv2 + bn2

        # Squeeze-and-Excitation: global average pool -> fc1 -> relu -> fc2 -> sigmoid
        pooled = jnp.sum(out, axis=1, keepdims=True) * (1.0 / HW)  # (C, 1)
        h = jnp.dot(f1w_ref[...], pooled,
                    preferred_element_type=jnp.float32) + f1b_ref[...]
        h = jnp.maximum(h, 0.0)                                    # (Cr, 1)
        z = jnp.dot(f2w_ref[...], h,
                    preferred_element_type=jnp.float32) + f2b_ref[...]
        s = 1.0 / (1.0 + jnp.exp(-z))                              # (C, 1) sigmoid
        out = out * s                                              # per-channel scale

        # identity residual + relu
        # TODO(synk): stride>1 / downsample branch not implemented (identity residual only).
        o_ref[0] = jnp.maximum(out + x, 0.0).astype(o_ref.dtype)

    return kernel


def se_basic_block(x_nchw, params):
    """x_nchw: (N, C, H, W) float32 (PyTorch layout).  Returns (N, C, H, W)."""
    N, C, H, W = x_nchw.shape
    HW = H * W
    Cr = params["fc1_w"].shape[1]

    # flat padded buffer: [zeros | image (row stride W) | zeros], interior 128-aligned
    pad_base = ((W + 1 + 127) // 128) * 128
    pad_len = ((pad_base + HW + W + 1 + 127) // 128) * 128

    x2 = x_nchw.reshape(N, C, HW)                        # layout plumbing only

    def fold(conv_w, scale, bias):
        # conv_w HWIO (3,3,Cin,Cout) -> im2col weights (Cout, 9*Cin) with BN folded in.
        cin, cout = conv_w.shape[2], conv_w.shape[3]
        taps = jnp.transpose(conv_w, (0, 1, 3, 2)).reshape(9, cout, cin)
        taps = taps * scale[None, :, None]               # fold BN scale per out-channel
        w2d = jnp.transpose(taps, (1, 0, 2)).reshape(cout, 9 * cin)
        return w2d, bias.reshape(cout, 1)

    w1, b1 = fold(params["conv1_w"], params["bn1_scale"], params["bn1_bias"])
    w2, b2 = fold(params["conv2_w"], params["bn2_scale"], params["bn2_bias"])
    f1w = params["fc1_w"].T                              # (Cr, C)
    f1b = params["fc1_b"].reshape(Cr, 1)
    f2w = params["fc2_w"].T                              # (C, Cr)
    f2b = params["fc2_b"].reshape(C, 1)

    args = (x2, w1, b1, w2, b2, f1w, f1b, f2w, f2b)

    def full_spec(shape):
        zeros = (0,) * len(shape)
        return pl.BlockSpec(shape, lambda n, z=zeros: z)

    in_specs = [pl.BlockSpec((1, C, HW), lambda n: (n, 0, 0))]
    in_specs += [full_spec(a.shape) for a in args[1:]]

    out2 = pl.pallas_call(
        _make_kernel(H, W, C, pad_base, pad_len),
        out_shape=jax.ShapeDtypeStruct((N, C, HW), x_nchw.dtype),
        grid=(N,),
        in_specs=in_specs,
        out_specs=pl.BlockSpec((1, C, HW), lambda n: (n, 0, 0)),
        scratch_shapes=[pltpu.VMEM((C, pad_len), jnp.float32)],
        compiler_params=pltpu.CompilerParams(dimension_semantics=("parallel",)),
    )(*args)

    return out2.reshape(N, C, H, W)


def reference(x, p):
    """Pure-JAX reference of the same forward pass (eval-mode BN), NCHW."""
    conv = lambda z, w: jax.lax.conv_general_dilated(
        z, w, window_strides=(1, 1), padding="SAME",
        dimension_numbers=("NCHW", "HWIO", "NCHW"))
    out = conv(x, p["conv1_w"])
    out = out * p["bn1_scale"].reshape(1, -1, 1, 1) + p["bn1_bias"].reshape(1, -1, 1, 1)
    out = jnp.maximum(out, 0.0)
    out = conv(out, p["conv2_w"])
    out = out * p["bn2_scale"].reshape(1, -1, 1, 1) + p["bn2_bias"].reshape(1, -1, 1, 1)
    y = jnp.mean(out, axis=(2, 3))                       # (N, C)
    h = jnp.maximum(y @ p["fc1_w"] + p["fc1_b"], 0.0)
    s = jax.nn.sigmoid(h @ p["fc2_w"] + p["fc2_b"])      # (N, C)
    out = out * s[:, :, None, None]
    return jnp.maximum(out + x, 0.0)


if __name__ == "__main__":
    N, H, W = 2, 16, 16
    inplanes = planes = 8          # SEBasicBlock(inplanes=8, planes=8, stride=1)
    reduction = 4
    Cr = planes // reduction
    eps = 1e-5

    key = jax.random.PRNGKey(0)
    ks = jax.random.split(key, 16)

    conv1_w = 0.1 * jax.random.normal(ks[0], (3, 3, inplanes, planes), jnp.float32)  # HWIO
    conv2_w = 0.1 * jax.random.normal(ks[1], (3, 3, planes, planes), jnp.float32)

    bn1_gamma = 1.0 + 0.1 * jax.random.normal(ks[2], (planes,), jnp.float32)
    bn1_beta = 0.1 * jax.random.normal(ks[3], (planes,), jnp.float32)
    bn1_mean = 0.1 * jax.random.normal(ks[4], (planes,), jnp.float32)
    bn1_var = jnp.abs(jax.random.normal(ks[5], (planes,), jnp.float32)) + 0.5
    bn2_gamma = 1.0 + 0.1 * jax.random.normal(ks[6], (planes,), jnp.float32)
    bn2_beta = 0.1 * jax.random.normal(ks[7], (planes,), jnp.float32)
    bn2_mean = 0.1 * jax.random.normal(ks[8], (planes,), jnp.float32)
    bn2_var = jnp.abs(jax.random.normal(ks[9], (planes,), jnp.float32)) + 0.5

    bn1_scale = bn1_gamma / jnp.sqrt(bn1_var + eps)
    bn1_bias = bn1_beta - bn1_mean * bn1_scale
    bn2_scale = bn2_gamma / jnp.sqrt(bn2_var + eps)
    bn2_bias = bn2_beta - bn2_mean * bn2_scale

    fc1_w = 0.2 * jax.random.normal(ks[10], (planes, Cr), jnp.float32)
    fc1_b = 0.1 * jax.random.normal(ks[11], (Cr,), jnp.float32)
    fc2_w = 0.2 * jax.random.normal(ks[12], (Cr, planes), jnp.float32)
    fc2_b = 0.1 * jax.random.normal(ks[13], (planes,), jnp.float32)

    x = jax.random.normal(ks[14], (N, inplanes, H, W), jnp.float32)   # NCHW

    params = dict(
        conv1_w=conv1_w, bn1_scale=bn1_scale, bn1_bias=bn1_bias,
        conv2_w=conv2_w, bn2_scale=bn2_scale, bn2_bias=bn2_bias,
        fc1_w=fc1_w, fc1_b=fc1_b, fc2_w=fc2_w, fc2_b=fc2_b,
    )

    out = se_basic_block(x, params)
    out = jax.block_until_ready(out)

    ref = reference(x, params)
    err = float(jnp.max(jnp.abs(out - ref)))
    ok = (out.shape == (N, planes, H, W)) and bool(jnp.all(jnp.isfinite(out))) and err < 1e-3
    if ok:
        print("KERNEL_OK")
    else:
        print(f"MISMATCH max_abs_err={err}")
</pallas_src>

<mosaic_0001>
module attributes {stable_mosaic.version = 11 : i64} {
  func.func @kernel(%arg0: i32, %arg1: memref<1x8x256xf32, #tpu.memory_space<vmem>>, %arg2: memref<8x72xf32, #tpu.memory_space<vmem>>, %arg3: memref<8x1xf32, #tpu.memory_space<vmem>>, %arg4: memref<8x72xf32, #tpu.memory_space<vmem>>, %arg5: memref<8x1xf32, #tpu.memory_space<vmem>>, %arg6: memref<2x8xf32, #tpu.memory_space<vmem>>, %arg7: memref<2x1xf32, #tpu.memory_space<vmem>>, %arg8: memref<8x2xf32, #tpu.memory_space<vmem>>, %arg9: memref<8x1xf32, #tpu.memory_space<vmem>>, %arg10: memref<1x8x256xf32, #tpu.memory_space<vmem>>, %arg11: memref<8x512xf32, #tpu.memory_space<vmem>>) attributes {dimension_semantics = [#tpu.dimension_semantics<parallel>], iteration_bounds = array<i64: 2>, scalar_prefetch = 0 : i64, scratch_operands = 1 : i64, tpu.core_type = #tpu.core_type<tc>, window_params = [{transform_indices = @transform_0, window_bounds = array<i64: 1, 8, 256>}, {pipeline_mode = #tpu.pipeline_mode<synchronous>, transform_indices = @transform_1, window_bounds = array<i64: 8, 72>}, {pipeline_mode = #tpu.pipeline_mode<synchronous>, transform_indices = @transform_2, window_bounds = array<i64: 8, 1>}, {pipeline_mode = #tpu.pipeline_mode<synchronous>, transform_indices = @transform_3, window_bounds = array<i64: 8, 72>}, {pipeline_mode = #tpu.pipeline_mode<synchronous>, transform_indices = @transform_4, window_bounds = array<i64: 8, 1>}, {pipeline_mode = #tpu.pipeline_mode<synchronous>, transform_indices = @transform_5, window_bounds = array<i64: 2, 8>}, {pipeline_mode = #tpu.pipeline_mode<synchronous>, transform_indices = @transform_6, window_bounds = array<i64: 2, 1>}, {pipeline_mode = #tpu.pipeline_mode<synchronous>, transform_indices = @transform_7, window_bounds = array<i64: 8, 2>}, {pipeline_mode = #tpu.pipeline_mode<synchronous>, transform_indices = @transform_8, window_bounds = array<i64: 8, 1>}, {transform_indices = @transform_9, window_bounds = array<i64: 1, 8, 256>}]} {
    %c0 = arith.constant 0 : index
    %c0_0 = arith.constant 0 : index
    %c0_1 = arith.constant 0 : index
    %0 = vector.load %arg1[%c0, %c0_0, %c0_1] : memref<1x8x256xf32, #tpu.memory_space<vmem>>, vector<1x8x256xf32>
    %1 = vector.shape_cast %0 : vector<1x8x256xf32> to vector<8x256xf32>
    %2 = tpu.iota {dimensions = array<i32: 1>} : vector<1x256xi32>
    %c15_i32 = arith.constant 15 : i32
    %3 = vector.broadcast %c15_i32 : i32 to vector<1x256xi32>
    %4 = arith.andi %2, %3 : vector<1x256xi32>
    %c1_i32 = arith.constant 1 : i32
    %5 = vector.broadcast %c1_i32 : i32 to vector<1x256xi32>
    %6 = arith.cmpi sge, %4, %5 : vector<1x256xi32>
    %c14_i32 = arith.constant 14 : i32
    %7 = vector.broadcast %c14_i32 : i32 to vector<1x256xi32>
    %8 = arith.cmpi sle, %4, %7 : vector<1x256xi32>
    %cst = arith.constant 0.000000e+00 : f32
    %9 = vector.broadcast %cst : f32 to vector<8x512xf32>
    %c0_2 = arith.constant 0 : index
    %c0_3 = arith.constant 0 : index
    %10 = vector.load %arg11[%c0_2, %c0_3] : memref<8x512xf32, #tpu.memory_space<vmem>>, vector<8x512xf32>
    tpu.vector_store %arg11[%c0_2, %c0_3], %9 {strides = array<i32>} : memref<8x512xf32, #tpu.memory_space<vmem>>, vector<8x512xf32>,
    %c0_4 = arith.constant 0 : index
    %c128 = arith.constant 128 : index
    %11 = vector.load %arg11[%c0_4, %c128] : memref<8x512xf32, #tpu.memory_space<vmem>>, vector<8x256xf32>
    tpu.vector_store %arg11[%c0_4, %c128], %1 {strides = array<i32>} : memref<8x512xf32, #tpu.memory_space<vmem>>, vector<8x256xf32>,
    %c0_5 = arith.constant 0 : index
    %c111 = arith.constant 111 : index
    %12 = vector.load %arg11[%c0_5, %c111] : memref<8x512xf32, #tpu.memory_space<vmem>>, vector<8x256xf32>
    %cst_6 = arith.constant 0.000000e+00 : f32
    %13 = vector.shape_cast %6 : vector<1x256xi1> to vector<1x256xi1>
    %14 = vector.broadcast %13 : vector<1x256xi1> to vector<8x256xi1>
    %15 = vector.broadcast %cst_6 : f32 to vector<8x256xf32>
    %16 = arith.select %14, %12, %15 : vector<8x256xi1>, vector<8x256xf32>
    %c0_7 = arith.constant 0 : index
    %c112 = arith.constant 112 : index
    %17 = vector.load %arg11[%c0_7, %c112] : memref<8x512xf32, #tpu.memory_space<vmem>>, vector<8x256xf32>
    %c0_8 = arith.constant 0 : index
    %c113 = arith.constant 113 : index
    %18 = vector.load %arg11[%c0_8, %c113] : memref<8x512xf32, #tpu.memory_space<vmem>>, vector<8x256xf32>
    %cst_9 = arith.constant 0.000000e+00 : f32
    %19 = vector.shape_cast %8 : vector<1x256xi1> to vector<1x256xi1>
    %20 = vector.broadcast %19 : vector<1x256xi1> to vector<8x256xi1>
    %21 = vector.broadcast %cst_9 : f32 to vector<8x256xf32>
    %22 = arith.select %20, %18, %21 : vector<8x256xi1>, vector<8x256xf32>
    %c0_10 = arith.constant 0 : index
    %c127 = arith.constant 127 : index
    %23 = vector.load %arg11[%c0_10, %c127] : memref<8x512xf32, #tpu.memory_space<vmem>>, vector<8x256xf32>
    %cst_11 = arith.constant 0.000000e+00 : f32
    %24 = vector.shape_cast %6 : vector<1x256xi1> to vector<1x256xi1>
    %25 = vector.broadcast %24 : vector<1x256xi1> to vector<8x256xi1>
    %26 = vector.broadcast %cst_11 : f32 to vector<8x256xf32>
    %27 = arith.select %25, %23, %26 : vector<8x256xi1>, vector<8x256xf32>
    %c0_12 = arith.constant 0 : index
    %c128_13 = arith.constant 128 : index
    %28 = vector.load %arg11[%c0_12, %c128_13] : memref<8x512xf32, #tpu.memory_space<vmem>>, vector<8x256xf32>
    %c0_14 = arith.constant 0 : index
    %c129 = arith.constant 129 : index
    %29 = vector.load %arg11[%c0_14, %c129] : memref<8x512xf32, #tpu.memory_space<vmem>>, vector<8x256xf32>
    %cst_15 = arith.constant 0.000000e+00 : f32
    %30 = vector.shape_cast %8 : vector<1x256xi1> to vector<1x256xi1>
    %31 = vector.broadcast %30 : vector<1x256xi1> to vector<8x256xi1>
    %32 = vector.broadcast %cst_15 : f32 to vector<8x256xf32>
    %33 = arith.select %31, %29, %32 : vector<8x256xi1>, vector<8x256xf32>
    %c0_16 = arith.constant 0 : index
    %c143 = arith.constant 143 : index
    %34 = vector.load %arg11[%c0_16, %c143] : memref<8x512xf32, #tpu.memory_space<vmem>>, vector<8x256xf32>
    %cst_17 = arith.constant 0.000000e+00 : f32
    %35 = vector.shape_cast %6 : vector<1x256xi1> to vector<1x256xi1>
    %36 = vector.broadcast %35 : vector<1x256xi1> to vector<8x256xi1>
    %37 = vector.broadcast %cst_17 : f32 to vector<8x256xf32>
    %38 = arith.select %36, %34, %37 : vector<8x256xi1>, vector<8x256xf32>
    %c0_18 = arith.constant 0 : index
    %c144 = arith.constant 144 : index
    %39 = vector.load %arg11[%c0_18, %c144] : memref<8x512xf32, #tpu.memory_space<vmem>>, vector<8x256xf32>
    %c0_19 = arith.constant 0 : index
    %c145 = arith.constant 145 : index
    %40 = vector.load %arg11[%c0_19, %c145] : memref<8x512xf32, #tpu.memory_space<vmem>>, vector<8x256xf32>
    %cst_20 = arith.constant 0.000000e+00 : f32
    %41 = vector.shape_cast %8 : vector<1x256xi1> to vector<1x256xi1>
    %42 = vector.broadcast %41 : vector<1x256xi1> to vector<8x256xi1>
    %43 = vector.broadcast %cst_20 : f32 to vector<8x256xf32>
    %44 = arith.select %42, %40, %43 : vector<8x256xi1>, vector<8x256xf32>
    %45 = tpu.concatenate %16, %17, %22, %27, %28, %33, %38, %39, %44 in 0 : vector<8x256xf32>, vector<8x256xf32>, vector<8x256xf32>, vector<8x256xf32>, vector<8x256xf32>, vector<8x256xf32>, vector<8x256xf32>, vector<8x256xf32>, vector<8x256xf32> -> vector<72x256xf32>
    %c0_21 = arith.constant 0 : index
    %c0_22 = arith.constant 0 : index
    %46 = vector.load %arg2[%c0_21, %c0_22] : memref<8x72xf32, #tpu.memory_space<vmem>>, vector<8x72xf32>
    %cst_23 = arith.constant dense<0.000000e+00> : vector<8x256xf32>
    %47 = tpu.matmul %46, %45, %cst_23 {dimension_numbers = #tpu.dot_dimension_numbers<[1], [0], [0], [1], [0, 0, 1, 1], [], []>} : vector<8x72xf32>, vector<72x256xf32>, vector<8x256xf32> -> vector<8x256xf32>
    %c0_24 = arith.constant 0 : index
    %c0_25 = arith.constant 0 : index
    %48 = vector.load %arg3[%c0_24, %c0_25] : memref<8x1xf32, #tpu.memory_space<vmem>>, vector<8x1xf32>
    %49 = vector.broadcast %48 : vector<8x1xf32> to vector<8x256xf32>
    %50 = arith.addf %47, %49 : vector<8x256xf32>
    %cst_26 = arith.constant 0.000000e+00 : f32
    %51 = vector.broadcast %cst_26 : f32 to vector<8x256xf32>
    %52 = arith.maximumf %50, %51 : vector<8x256xf32>
    %c0_27 = arith.constant 0 : index
    %c128_28 = arith.constant 128 : index
    %53 = vector.load %arg11[%c0_27, %c128_28] : memref<8x512xf32, #tpu.memory_space<vmem>>, vector<8x256xf32>
    tpu.vector_store %arg11[%c0_27, %c128_28], %52 {strides = array<i32>} : memref<8x512xf32, #tpu.memory_space<vmem>>, vector<8x256xf32>,
    %c0_29 = arith.constant 0 : index
    %c111_30 = arith.constant 111 : index
    %54 = vector.load %arg11[%c0_29, %c111_30] : memref<8x512xf32, #tpu.memory_space<vmem>>, vector<8x256xf32>
    %cst_31 = arith.constant 0.000000e+00 : f32
    %55 = vector.shape_cast %6 : vector<1x256xi1> to vector<1x256xi1>
    %56 = vector.broadcast %55 : vector<1x256xi1> to vector<8x256xi1>
    %57 = vector.broadcast %cst_31 : f32 to vector<8x256xf32>
    %58 = arith.select %56, %54, %57 : vector<8x256xi1>, vector<8x256xf32>
    %c0_32 = arith.constant 0 : index
    %c112_33 = arith.constant 112 : index
    %59 = vector.load %arg11[%c0_32, %c112_33] : memref<8x512xf32, #tpu.memory_space<vmem>>, vector<8x256xf32>
    %c0_34 = arith.constant 0 : index
    %c113_35 = arith.constant 113 : index
    %60 = vector.load %arg11[%c0_34, %c113_35] : memref<8x512xf32, #tpu.memory_space<vmem>>, vector<8x256xf32>
    %cst_36 = arith.constant 0.000000e+00 : f32
    %61 = vector.shape_cast %8 : vector<1x256xi1> to vector<1x256xi1>
    %62 = vector.broadcast %61 : vector<1x256xi1> to vector<8x256xi1>
    %63 = vector.broadcast %cst_36 : f32 to vector<8x256xf32>
    %64 = arith.select %62, %60, %63 : vector<8x256xi1>, vector<8x256xf32>
    %c0_37 = arith.constant 0 : index
    %c127_38 = arith.constant 127 : index
    %65 = vector.load %arg11[%c0_37, %c127_38] : memref<8x512xf32, #tpu.memory_space<vmem>>, vector<8x256xf32>
    %cst_39 = arith.constant 0.000000e+00 : f32
    %66 = vector.shape_cast %6 : vector<1x256xi1> to vector<1x256xi1>
    %67 = vector.broadcast %66 : vector<1x256xi1> to vector<8x256xi1>
    %68 = vector.broadcast %cst_39 : f32 to vector<8x256xf32>
    %69 = arith.select %67, %65, %68 : vector<8x256xi1>, vector<8x256xf32>
    %c0_40 = arith.constant 0 : index
    %c128_41 = arith.constant 128 : index
    %70 = vector.load %arg11[%c0_40, %c128_41] : memref<8x512xf32, #tpu.memory_space<vmem>>, vector<8x256xf32>
    %c0_42 = arith.constant 0 : index
    %c129_43 = arith.constant 129 : index
    %71 = vector.load %arg11[%c0_42, %c129_43] : memref<8x512xf32, #tpu.memory_space<vmem>>, vector<8x256xf32>
    %cst_44 = arith.constant 0.000000e+00 : f32
    %72 = vector.shape_cast %8 : vector<1x256xi1> to vector<1x256xi1>
    %73 = vector.broadcast %72 : vector<1x256xi1> to vector<8x256xi1>
    %74 = vector.broadcast %cst_44 : f32 to vector<8x256xf32>
    %75 = arith.select %73, %71, %74 : vector<8x256xi1>, vector<8x256xf32>
    %c0_45 = arith.constant 0 : index
    %c143_46 = arith.constant 143 : index
    %76 = vector.load %arg11[%c0_45, %c143_46] : memref<8x512xf32, #tpu.memory_space<vmem>>, vector<8x256xf32>
    %cst_47 = arith.constant 0.000000e+00 : f32
    %77 = vector.shape_cast %6 : vector<1x256xi1> to vector<1x256xi1>
    %78 = vector.broadcast %77 : vector<1x256xi1> to vector<8x256xi1>
    %79 = vector.broadcast %cst_47 : f32 to vector<8x256xf32>
    %80 = arith.select %78, %76, %79 : vector<8x256xi1>, vector<8x256xf32>
    %c0_48 = arith.constant 0 : index
    %c144_49 = arith.constant 144 : index
    %81 = vector.load %arg11[%c0_48, %c144_49] : memref<8x512xf32, #tpu.memory_space<vmem>>, vector<8x256xf32>
    %c0_50 = arith.constant 0 : index
    %c145_51 = arith.constant 145 : index
    %82 = vector.load %arg11[%c0_50, %c145_51] : memref<8x512xf32, #tpu.memory_space<vmem>>, vector<8x256xf32>
    %cst_52 = arith.constant 0.000000e+00 : f32
    %83 = vector.shape_cast %8 : vector<1x256xi1> to vector<1x256xi1>
    %84 = vector.broadcast %83 : vector<1x256xi1> to vector<8x256xi1>
    %85 = vector.broadcast %cst_52 : f32 to vector<8x256xf32>
    %86 = arith.select %84, %82, %85 : vector<8x256xi1>, vector<8x256xf32>
    %87 = tpu.concatenate %58, %59, %64, %69, %70, %75, %80, %81, %86 in 0 : vector<8x256xf32>, vector<8x256xf32>, vector<8x256xf32>, vector<8x256xf32>, vector<8x256xf32>, vector<8x256xf32>, vector<8x256xf32>, vector<8x256xf32>, vector<8x256xf32> -> vector<72x256xf32>
    %c0_53 = arith.constant 0 : index
    %c0_54 = arith.constant 0 : index
    %88 = vector.load %arg4[%c0_53, %c0_54] : memref<8x72xf32, #tpu.memory_space<vmem>>, vector<8x72xf32>
    %cst_55 = arith.constant dense<0.000000e+00> : vector<8x256xf32>
    %89 = tpu.matmul %88, %87, %cst_55 {dimension_numbers = #tpu.dot_dimension_numbers<[1], [0], [0], [1], [0, 0, 1, 1], [], []>} : vector<8x72xf32>, vector<72x256xf32>, vector<8x256xf32> -> vector<8x256xf32>
    %c0_56 = arith.constant 0 : index
    %c0_57 = arith.constant 0 : index
    %90 = vector.load %arg5[%c0_56, %c0_57] : memref<8x1xf32, #tpu.memory_space<vmem>>, vector<8x1xf32>
    %91 = vector.broadcast %90 : vector<8x1xf32> to vector<8x256xf32>
    %92 = arith.addf %89, %91 : vector<8x256xf32>
    %cst_58 = arith.constant dense<0.000000e+00> : vector<8xf32>
    %93 = vector.multi_reduction <add>, %92, %cst_58 [1] : vector<8x256xf32> to vector<8xf32>
    %94 = vector.shape_cast %93 : vector<8xf32> to vector<8x1xf32>
    %cst_59 = arith.constant 3.906250e-03 : f32
    %95 = vector.broadcast %cst_59 : f32 to vector<8x1xf32>
    %96 = arith.mulf %94, %95 : vector<8x1xf32>
    %c0_60 = arith.constant 0 : index
    %c0_61 = arith.constant 0 : index
    %97 = vector.load %arg6[%c0_60, %c0_61] : memref<2x8xf32, #tpu.memory_space<vmem>>, vector<2x8xf32>
    %cst_62 = arith.constant dense<0.000000e+00> : vector<2x1xf32>
    %98 = tpu.matmul %97, %96, %cst_62 {dimension_numbers = #tpu.dot_dimension_numbers<[1], [0], [0], [1], [0, 0, 1, 1], [], []>} : vector<2x8xf32>, vector<8x1xf32>, vector<2x1xf32> -> vector<2x1xf32>
    %c0_63 = arith.constant 0 : index
    %c0_64 = arith.constant 0 : index
    %99 = vector.load %arg7[%c0_63, %c0_64] : memref<2x1xf32, #tpu.memory_space<vmem>>, vector<2x1xf32>
    %100 = arith.addf %98, %99 : vector<2x1xf32>
    %cst_65 = arith.constant 0.000000e+00 : f32
    %101 = vector.broadcast %cst_65 : f32 to vector<2x1xf32>
    %102 = arith.maximumf %100, %101 : vector<2x1xf32>
    %c0_66 = arith.constant 0 : index
    %c0_67 = arith.constant 0 : index
    %103 = vector.load %arg8[%c0_66, %c0_67] : memref<8x2xf32, #tpu.memory_space<vmem>>, vector<8x2xf32>
    %cst_68 = arith.constant dense<0.000000e+00> : vector<8x1xf32>
    %104 = tpu.matmul %103, %102, %cst_68 {dimension_numbers = #tpu.dot_dimension_numbers<[1], [0], [0], [1], [0, 0, 1, 1], [], []>} : vector<8x2xf32>, vector<2x1xf32>, vector<8x1xf32> -> vector<8x1xf32>
    %c0_69 = arith.constant 0 : index
    %c0_70 = arith.constant 0 : index
    %105 = vector.load %arg9[%c0_69, %c0_70] : memref<8x1xf32, #tpu.memory_space<vmem>>, vector<8x1xf32>
    %106 = arith.addf %104, %105 : vector<8x1xf32>
    %cst_71 = arith.constant 0.000000e+00 : f32
    %107 = vector.broadcast %cst_71 : f32 to vector<8x1xf32>
    %108 = arith.subf %107, %106 : vector<8x1xf32>
    %109 = math.exp %108 : vector<8x1xf32>
    %cst_72 = arith.constant 1.000000e+00 : f32
    %110 = vector.broadcast %cst_72 : f32 to vector<8x1xf32>
    %111 = arith.addf %110, %109 : vector<8x1xf32>
    %cst_73 = arith.constant 1.000000e+00 : f32
    %112 = vector.broadcast %cst_73 : f32 to vector<8x1xf32>
    %113 = arith.divf %112, %111 : vector<8x1xf32>
    %114 = vector.broadcast %113 : vector<8x1xf32> to vector<8x256xf32>
    %115 = arith.mulf %92, %114 : vector<8x256xf32>
    %116 = arith.addf %115, %1 : vector<8x256xf32>
    %cst_74 = arith.constant 0.000000e+00 : f32
    %117 = vector.broadcast %cst_74 : f32 to vector<8x256xf32>
    %118 = arith.maximumf %116, %117 : vector<8x256xf32>
    %c0_75 = arith.constant 0 : index
    %c0_76 = arith.constant 0 : index
    %c0_77 = arith.constant 0 : index
    %119 = vector.load %arg10[%c0_75, %c0_76, %c0_77] : memref<1x8x256xf32, #tpu.memory_space<vmem>>, vector<1x8x256xf32>
    %120 = vector.shape_cast %119 : vector<1x8x256xf32> to vector<8x256xf32>
    %121 = vector.shape_cast %118 : vector<8x256xf32> to vector<1x8x256xf32>
    tpu.vector_store %arg10[%c0_75, %c0_76, %c0_77], %121 {strides = array<i32>} : memref<1x8x256xf32, #tpu.memory_space<vmem>>, vector<1x8x256xf32>,
    return
  }
  func.func @transform_0(%arg0: i32) -> (i32, i32, i32) {
    %c0_i32 = arith.constant 0 : i32
    %c0_i32_0 = arith.constant 0 : i32
    %c0_i32_1 = arith.constant 0 : i32
    return %arg0, %c0_i32, %c0_i32_0 : i32, i32, i32
  }
  func.func @transform_1(%arg0: i32) -> (i32, i32) {
    %c0_i32 = arith.constant 0 : i32
    %c0_i32_0 = arith.constant 0 : i32
    %c0_i32_1 = arith.constant 0 : i32
    return %c0_i32, %c0_i32_0 : i32, i32
  }
  func.func @transform_2(%arg0: i32) -> (i32, i32) {
    %c0_i32 = arith.constant 0 : i32
    %c0_i32_0 = arith.constant 0 : i32
    %c0_i32_1 = arith.constant 0 : i32
    return %c0_i32, %c0_i32_0 : i32, i32
  }
  func.func @transform_3(%arg0: i32) -> (i32, i32) {
    %c0_i32 = arith.constant 0 : i32
    %c0_i32_0 = arith.constant 0 : i32
    %c0_i32_1 = arith.constant 0 : i32
    return %c0_i32, %c0_i32_0 : i32, i32
  }
  func.func @transform_4(%arg0: i32) -> (i32, i32) {
    %c0_i32 = arith.constant 0 : i32
    %c0_i32_0 = arith.constant 0 : i32
    %c0_i32_1 = arith.constant 0 : i32
    return %c0_i32, %c0_i32_0 : i32, i32
  }
  func.func @transform_5(%arg0: i32) -> (i32, i32) {
    %c0_i32 = arith.constant 0 : i32
    %c0_i32_0 = arith.constant 0 : i32
    %c0_i32_1 = arith.constant 0 : i32
    return %c0_i32, %c0_i32_0 : i32, i32
  }
  func.func @transform_6(%arg0: i32) -> (i32, i32) {
    %c0_i32 = arith.constant 0 : i32
    %c0_i32_0 = arith.constant 0 : i32
    %c0_i32_1 = arith.constant 0 : i32
    return %c0_i32, %c0_i32_0 : i32, i32
  }
  func.func @transform_7(%arg0: i32) -> (i32, i32) {
    %c0_i32 = arith.constant 0 : i32
    %c0_i32_0 = arith.constant 0 : i32
    %c0_i32_1 = arith.constant 0 : i32
    return %c0_i32, %c0_i32_0 : i32, i32
  }
  func.func @transform_8(%arg0: i32) -> (i32, i32) {
    %c0_i32 = arith.constant 0 : i32
    %c0_i32_0 = arith.constant 0 : i32
    %c0_i32_1 = arith.constant 0 : i32
    return %c0_i32, %c0_i32_0 : i32, i32
  }
  func.func @transform_9(%arg0: i32) -> (i32, i32, i32) {
    %c0_i32 = arith.constant 0 : i32
    %c0_i32_0 = arith.constant 0 : i32
    %c0_i32_1 = arith.constant 0 : i32
    return %arg0, %c0_i32, %c0_i32_0 : i32, i32, i32
  }
}

</mosaic_0001>

<llo_original>
// kernel: tpu_custom_call.1
$region0: #{tpu_custom_call.1}
  #allocation0 [shape = 'u32[]', space=smem, size = 0x4, offset = 0x4, fixed_abs, tag = 'smem constant byte address 0x4 - core index']
  #allocation1 [shape = 'u32[72,128]{1,0:T(1,128)}', space=vmem, size = 0x9000, scoped, tag = 'internal scratch']
  #allocation2 [shape = 'f32[8,512]{1,0:T(8,128)}', space=vmem, size = 0x4000, scoped, tag = 'scratch operand']
  %s0 = inlined_call_operand.hbm [shape: f32[2,8,256], index: 0, kind: input, shape index: {}]
  %s1 = inlined_call_operand.vmem [shape: f32[8,72], index: 1, kind: input, shape index: {}]
  %s2 = inlined_call_operand.vmem [shape: f32[8,1], index: 2, kind: input, shape index: {}]
  %s3 = inlined_call_operand.vmem [shape: f32[8,72], index: 3, kind: input, shape index: {}]
  %s4 = inlined_call_operand.vmem [shape: f32[8,1], index: 4, kind: input, shape index: {}]
  %s5 = inlined_call_operand.vmem [shape: f32[2,8], index: 5, kind: input, shape index: {}]
  %s6 = inlined_call_operand.vmem [shape: f32[2,1], index: 6, kind: input, shape index: {}]
  %s7 = inlined_call_operand.vmem [shape: f32[8,2], index: 7, kind: input, shape index: {}]
  %s8 = inlined_call_operand.vmem [shape: f32[8,1], index: 8, kind: input, shape index: {}]
  %s9 = inlined_call_operand.hbm [shape: f32[2,8,256], index: 9, kind: output, shape index: {}]
  %s10 = sld [smem:[#allocation0]]
  $region73: #{tpu_custom_call.1} parent=0
    _
  %s12 = ssub.s32 1, %s10
  %s13 = scalar_select 0, %s12, %s10
  $region1: #{tpu_custom_call.1} parent=0
    #allocation3 [shape = 'u8[16384]{0}', space=vmem, size = 0x4000, scoped, tag = 'input window, operand 0']
    #allocation4 [shape = 's32[2]{0}', space=sflag, size = 0x8, scoped, tag = 'scoped memory for tpu_custom_call.1']
    #allocation5 [shape = 's32[2]{0}', space=sflag, size = 0x8, scoped, tag = 'scoped memory for tpu_custom_call.1']
    #allocation6 [shape = 'u8[16384]{0}', space=vmem, size = 0x4000, scoped, tag = 'output window, operand 0']
    %14 = vsyncpa [#allocation4], 0
    %s15 = scalar_lea.sflag [#allocation4], 1
    %16 = vsyncpa %s15, 0
    %17 = vsyncpa [#allocation5], 0
    %s18 = scalar_lea.sflag [#allocation5], 1
    %19 = vsyncpa %s18, 0
    loop: start=0, step=1, limit=4
    $region2: #{tpu_custom_call.1} parent=1 // loop_pre_header
      _
    $region3: #{tpu_custom_call.1} parent=1 // loop_header
      %s21 = sphi 0, %s25
      %p22 = scmp.ge.s32.totalorder %s21, 4
      %s31 = sphi 0, %s33
      %s34 = sphi 0, %s31
      %s35 = sphi 0, %s34
      %s51 = sphi 0, %s35
      %s55 = sphi 0, %s55
      %s57 = sphi 0, %s55
      %s58 = sphi 0, %s57
      %s72 = sphi 0, %s58
      %s76 = sphi 0, %s76
      %s78 = sphi 0, %s76
      %s79 = sphi 0, %s78
      %s93 = sphi 0, %s79
      %s97 = sphi 0, %s97
      %s99 = sphi 0, %s97
      %s100 = sphi 0, %s99
      %s114 = sphi 0, %s100
      %s118 = sphi 0, %s118
      %s120 = sphi 0, %s118
      %s121 = sphi 0, %s120
      %s135 = sphi 0, %s121
      %s139 = sphi 0, %s139
      %s141 = sphi 0, %s139
      %s142 = sphi 0, %s141
      %s156 = sphi 0, %s142
      %s160 = sphi 0, %s160
      %s162 = sphi 0, %s160
      %s163 = sphi 0, %s162
      %s177 = sphi 0, %s163
      %s181 = sphi 0, %s181
      %s183 = sphi 0, %s181
      %s184 = sphi 0, %s183
      %s198 = sphi 0, %s184
      %s202 = sphi 0, %s202
      %s204 = sphi 0, %s202
      %s205 = sphi 0, %s204
      %s219 = sphi 0, %s205
      %s225 = sphi 0, %s227
      %s228 = sphi 0, %s225
      %s229 = sphi 0, %s228
      %s245 = sphi 0, %s229
    $region4: #{tpu_custom_call.1} parent=1 // loop_header_branch
      %24 = sbr.rel (%p22) target = $region8
    $region5: #{tpu_custom_call.1} parent=1 // loop_body
      %s26 = ssub.s32 %s21, 1
      %s27 = ssub.s32 %s21, 2
      %s28 = sadd.s32 %s21, 1
      %s29 = ssub.s32 %s21, %s28
      %p30 = scmp.eq.s32.totalorder %s29, 0
      %s32 = sadd.s32 %s31, 1
      %s33 = scalar_select %p30, %s31, %s32
      %p36 = pneg %p30
      %p37 = scmp.eq.s32.totalorder %s21, 1
      %p38 = por %p36, %p37
      %p39 = scmp.ne.s32.totalorder %s31, %s34
      %p40 = scmp.eq.s32.totalorder %s21, 0
      %p41 = por %p39, %p40
      %p42 = scmp.ne.s32.totalorder %s31, %s34
      %p43 = scmp.eq.s32.totalorder %s26, 1
      %p44 = por %p42, %p43
      %p45 = scmp.ne.s32.totalorder %s34, %s35
      %p46 = scmp.eq.s32.totalorder %s26, 0
      %p47 = por %p45, %p46
      %p48 = scmp.ne.s32.totalorder %s34, %s35
      %p49 = scmp.eq.s32.totalorder %s27, 1
      %p50 = por %p48, %p49
      %p52 = scmp.ne.s32.totalorder %s35, %s51
      %p53 = scmp.eq.s32.totalorder %s27, 0
      %p54 = por %p52, %p53
      %s56 = sadd.s32 %s55, 1
      %p59 = scmp.eq.s32.totalorder %s21, 1
      %p60 = scmp.ne.s32.totalorder %s55, %s57
      %p61 = scmp.eq.s32.totalorder %s21, 0
      %p62 = por %p60, %p61
      %p63 = scmp.ne.s32.totalorder %s55, %s57
      %p64 = scmp.eq.s32.totalorder %s26, 1
      %p65 = por %p63, %p64
      %p66 = scmp.ne.s32.totalorder %s57, %s58
      %p67 = scmp.eq.s32.totalorder %s26, 0
      %p68 = por %p66, %p67
      %p69 = scmp.ne.s32.totalorder %s57, %s58
      %p70 = scmp.eq.s32.totalorder %s27, 1
      %p71 = por %p69, %p70
      %p73 = scmp.ne.s32.totalorder %s58, %s72
      %p74 = scmp.eq.s32.totalorder %s27, 0
      %p75 = por %p73, %p74
      %s77 = sadd.s32 %s76, 1
      %p80 = scmp.eq.s32.totalorder %s21, 1
      %p81 = scmp.ne.s32.totalorder %s76, %s78
      %p82 = scmp.eq.s32.totalorder %s21, 0
      %p83 = por %p81, %p82
      %p84 = scmp.ne.s32.totalorder %s76, %s78
      %p85 = scmp.eq.s32.totalorder %s26, 1
      %p86 = por %p84, %p85
      %p87 = scmp.ne.s32.totalorder %s78, %s79
      %p88 = scmp.eq.s32.totalorder %s26, 0
      %p89 = por %p87, %p88
      %p90 = scmp.ne.s32.totalorder %s78, %s79
      %p91 = scmp.eq.s32.totalorder %s27, 1
      %p92 = por %p90, %p91
      %p94 = scmp.ne.s32.totalorder %s79, %s93
      %p95 = scmp.eq.s32.totalorder %s27, 0
      %p96 = por %p94, %p95
      %s98 = sadd.s32 %s97, 1
      %p101 = scmp.eq.s32.totalorder %s21, 1
      %p102 = scmp.ne.s32.totalorder %s97, %s99
      %p103 = scmp.eq.s32.totalorder %s21, 0
      %p104 = por %p102, %p103
      %p105 = scmp.ne.s32.totalorder %s97, %s99
      %p106 = scmp.eq.s32.totalorder %s26, 1
      %p107 = por %p105, %p106
      %p108 = scmp.ne.s32.totalorder %s99, %s100
      %p109 = scmp.eq.s32.totalorder %s26, 0
      %p110 = por %p108, %p109
      %p111 = scmp.ne.s32.totalorder %s99, %s100
      %p112 = scmp.eq.s32.totalorder %s27, 1
      %p113 = por %p111, %p112
      %p115 = scmp.ne.s32.totalorder %s100, %s114
      %p116 = scmp.eq.s32.totalorder %s27, 0
      %p117 = por %p115, %p116
      %s119 = sadd.s32 %s118, 1
      %p122 = scmp.eq.s32.totalorder %s21, 1
      %p123 = scmp.ne.s32.totalorder %s118, %s120
      %p124 = scmp.eq.s32.totalorder %s21, 0
      %p125 = por %p123, %p124
      %p126 = scmp.ne.s32.totalorder %s118, %s120
      %p127 = scmp.eq.s32.totalorder %s26, 1
      %p128 = por %p126, %p127
      %p129 = scmp.ne.s32.totalorder %s120, %s121
      %p130 = scmp.eq.s32.totalorder %s26, 0
      %p131 = por %p129, %p130
      %p132 = scmp.ne.s32.totalorder %s120, %s121
      %p133 = scmp.eq.s32.totalorder %s27, 1
      %p134 = por %p132, %p133
      %p136 = scmp.ne.s32.totalorder %s121, %s135
      %p137 = scmp.eq.s32.totalorder %s27, 0
      %p138 = por %p136, %p137
      %s140 = sadd.s32 %s139, 1
      %p143 = scmp.eq.s32.totalorder %s21, 1
      %p144 = scmp.ne.s32.totalorder %s139, %s141
      %p145 = scmp.eq.s32.totalorder %s21, 0
      %p146 = por %p144, %p145
      %p147 = scmp.ne.s32.totalorder %s139, %s141
      %p148 = scmp.eq.s32.totalorder %s26, 1
      %p149 = por %p147, %p148
      %p150 = scmp.ne.s32.totalorder %s141, %s142
      %p151 = scmp.eq.s32.totalorder %s26, 0
      %p152 = por %p150, %p151
      %p153 = scmp.ne.s32.totalorder %s141, %s142
      %p154 = scmp.eq.s32.totalorder %s27, 1
      %p155 = por %p153, %p154
      %p157 = scmp.ne.s32.totalorder %s142, %s156
      %p158 = scmp.eq.s32.totalorder %s27, 0
      %p159 = por %p157, %p158
      %s161 = sadd.s32 %s160, 1
      %p164 = scmp.eq.s32.totalorder %s21, 1
      %p165 = scmp.ne.s32.totalorder %s160, %s162
      %p166 = scmp.eq.s32.totalorder %s21, 0
      %p167 = por %p165, %p166
      %p168 = scmp.ne.s32.totalorder %s160, %s162
      %p169 = scmp.eq.s32.totalorder %s26, 1
      %p170 = por %p168, %p169
      %p171 = scmp.ne.s32.totalorder %s162, %s163
      %p172 = scmp.eq.s32.totalorder %s26, 0
      %p173 = por %p171, %p172
      %p174 = scmp.ne.s32.totalorder %s162, %s163
      %p175 = scmp.eq.s32.totalorder %s27, 1
      %p176 = por %p174, %p175
      %p178 = scmp.ne.s32.totalorder %s163, %s177
      %p179 = scmp.eq.s32.totalorder %s27, 0
      %p180 = por %p178, %p179
      %s182 = sadd.s32 %s181, 1
      %p185 = scmp.eq.s32.totalorder %s21, 1
      %p186 = scmp.ne.s32.totalorder %s181, %s183
      %p187 = scmp.eq.s32.totalorder %s21, 0
      %p188 = por %p186, %p187
      %p189 = scmp.ne.s32.totalorder %s181, %s183
      %p190 = scmp.eq.s32.totalorder %s26, 1
      %p191 = por %p189, %p190
      %p192 = scmp.ne.s32.totalorder %s183, %s184
      %p193 = scmp.eq.s32.totalorder %s26, 0
      %p194 = por %p192, %p193
      %p195 = scmp.ne.s32.totalorder %s183, %s184
      %p196 = scmp.eq.s32.totalorder %s27, 1
      %p197 = por %p195, %p196
      %p199 = scmp.ne.s32.totalorder %s184, %s198
      %p200 = scmp.eq.s32.totalorder %s27, 0
      %p201 = por %p199, %p200
      %s203 = sadd.s32 %s202, 1
      %p206 = scmp.eq.s32.totalorder %s21, 1
      %p207 = scmp.ne.s32.totalorder %s202, %s204
      %p208 = scmp.eq.s32.totalorder %s21, 0
      %p209 = por %p207, %p208
      %p210 = scmp.ne.s32.totalorder %s202, %s204
      %p211 = scmp.eq.s32.totalorder %s26, 1
      %p212 = por %p210, %p211
      %p213 = scmp.ne.s32.totalorder %s204, %s205
      %p214 = scmp.eq.s32.totalorder %s26, 0
      %p215 = por %p213, %p214
      %p216 = scmp.ne.s32.totalorder %s204, %s205
      %p217 = scmp.eq.s32.totalorder %s27, 1
      %p218 = por %p216, %p217
      %p220 = scmp.ne.s32.totalorder %s205, %s219
      %p221 = scmp.eq.s32.totalorder %s27, 0
      %p222 = por %p220, %p221
      %s223 = ssub.s32 %s21, %s28
      %p224 = scmp.eq.s32.totalorder %s223, 0
      %s226 = sadd.s32 %s225, 1
      %s227 = scalar_select %p224, %s225, %s226
      %p230 = pneg %p224
      %p231 = scmp.eq.s32.totalorder %s21, 1
      %p232 = por %p230, %p231
      %p233 = scmp.ne.s32.totalorder %s225, %s228
      %p234 = scmp.eq.s32.totalorder %s21, 0
      %p235 = por %p233, %p234
      %p236 = scmp.ne.s32.totalorder %s225, %s228
      %p237 = scmp.eq.s32.totalorder %s26, 1
      %p238 = por %p236, %p237
      %p239 = scmp.ne.s32.totalorder %s228, %s229
      %p240 = scmp.eq.s32.totalorder %s26, 0
      %p241 = por %p239, %p240
      %p242 = scmp.ne.s32.totalorder %s228, %s229
      %p243 = scmp.eq.s32.totalorder %s27, 1
      %p244 = por %p242, %p243
      %p246 = scmp.ne.s32.totalorder %s229, %s245
      %p247 = scmp.eq.s32.totalorder %s27, 0
      %p248 = por %p246, %p247
      %p249 = scmp.le.s32.totalorder 1, %s21
      %p250 = scmp.lt.s32.totalorder %s21, 3
      %p251 = pnand %p249, %p250
      %p252 = pneg %p251
      // Predicated region
      $region9: #{tpu_custom_call.1} parent=5 // pred_check
        _
      $region10: #{tpu_custom_call.1} parent=5 // pred_check_branch
        %254 = sbr.rel (%p251) target = $region12
      $region11: #{tpu_custom_call.1} parent=5 // pred_region
        %s255 = ssub.s32 %s21, 1
        // Predicated region
        $region13: #{tpu_custom_call.1} parent=11 // pred_check
          %p256 = pneg %p68
        $region14: #{tpu_custom_call.1} parent=11 // pred_check_branch
          %258 = sbr.rel (%p256) target = $region16
        $region15: #{tpu_custom_call.1} parent=11 // pred_region
          _
        $region16: #{tpu_custom_call.1} parent=11 // pred_fallthru
          _
        // Predicated region
        $region17: #{tpu_custom_call.1} parent=11 // pred_check
          %p259 = pneg %p89
        $region18: #{tpu_custom_call.1} parent=11 // pred_check_branch
          %261 = sbr.rel (%p259) target = $region20
        $region19: #{tpu_custom_call.1} parent=11 // pred_region
          _
        $region20: #{tpu_custom_call.1} parent=11 // pred_fallthru
          _
        // Predicated region
        $region21: #{tpu_custom_call.1} parent=11 // pred_check
          %p262 = pneg %p110
        $region22: #{tpu_custom_call.1} parent=11 // pred_check_branch
          %264 = sbr.rel (%p262) target = $region24
        $region23: #{tpu_custom_call.1} parent=11 // pred_region
          _
        $region24: #{tpu_custom_call.1} parent=11 // pred_fallthru
          _
        // Predicated region
        $region25: #{tpu_custom_call.1} parent=11 // pred_check
          %p265 = pneg %p131
        $region26: #{tpu_custom_call.1} parent=11 // pred_check_branch
          %267 = sbr.rel (%p265) target = $region28
        $region27: #{tpu_custom_call.1} parent=11 // pred_region
          _
        $region28: #{tpu_custom_call.1} parent=11 // pred_fallthru
          _
        // Predicated region
        $region29: #{tpu_custom_call.1} parent=11 // pred_check
          %p268 = pneg %p152
        $region30: #{tpu_custom_call.1} parent=11 // pred_check_branch
          %270 = sbr.rel (%p268) target = $region32
        $region31: #{tpu_custom_call.1} parent=11 // pred_region
          _
        $region32: #{tpu_custom_call.1} parent=11 // pred_fallthru
          _
        // Predicated region
        $region33: #{tpu_custom_call.1} parent=11 // pred_check
          %p271 = pneg %p173
        $region34: #{tpu_custom_call.1} parent=11 // pred_check_branch
          %273 = sbr.rel (%p271) target = $region36
        $region35: #{tpu_custom_call.1} parent=11 // pred_region
          _
        $region36: #{tpu_custom_call.1} parent=11 // pred_fallthru
          _
        // Predicated region
        $region37: #{tpu_custom_call.1} parent=11 // pred_check
          %p274 = pneg %p194
        $region38: #{tpu_custom_call.1} parent=11 // pred_check_branch
          %276 = sbr.rel (%p274) target = $region40
        $region39: #{tpu_custom_call.1} parent=11 // pred_region
          _
        $region40: #{tpu_custom_call.1} parent=11 // pred_fallthru
          _
        // Predicated region
        $region41: #{tpu_custom_call.1} parent=11 // pred_check
          %p277 = pneg %p215
        $region42: #{tpu_custom_call.1} parent=11 // pred_check_branch
          %279 = sbr.rel (%p277) target = $region44
        $region43: #{tpu_custom_call.1} parent=11 // pred_region
          _
        $region44: #{tpu_custom_call.1} parent=11 // pred_fallthru
          _
      $region12: #{tpu_custom_call.1} parent=5 // pred_fallthru
        _
      %p280 = scmp.lt.s32.totalorder %s21, 2
      // Predicated region
      $region45: #{tpu_custom_call.1} parent=5 // pred_check
        %p281 = pneg %p280
      $region46: #{tpu_custom_call.1} parent=5 // pred_check_branch
        %283 = sbr.rel (%p281) target = $region48
      $region47: #{tpu_custom_call.1} parent=5 // pred_region
        // Predicated region
        $region49: #{tpu_custom_call.1} parent=47 // pred_check
          %p284 = pneg %p41
        $region50: #{tpu_custom_call.1} parent=47 // pred_check_branch
          %286 = sbr.rel (%p284) target = $region52
        $region51: #{tpu_custom_call.1} parent=47 // pred_region
          %s287 = sand.u32 %s31, 1
          %s288 = scalar_lea.sflag [#allocation4], %s287
          %s289 = sand.u32 %s31, 1
          %s290 = smul.addr %s289, 16
          %s291 = scalar_lea.vmem [#allocation3], %s290
          %293 = vsyncadd %s288, 0
          %s294 = smul.addr %s21, 2
          %s295 = smul.addr %s294, 8
          %s296 = scalar_lea.hbm %s0, %s295
          %s298 = sshll.u32 %s296, 4
          %s299 = int_to_ptr.hbm [resolvable:$true] %s298
          %s300 = sshll.u32 %s291, 4
          %s301 = int_to_ptr.vmem [resolvable:$true] %s300
          %303 = dma.hbm_to_vmem [thread:$0]  %s299, 256, %s301, %s288
        $region52: #{tpu_custom_call.1} parent=47 // pred_fallthru
          _
      $region48: #{tpu_custom_call.1} parent=5 // pred_fallthru
        _
      %p304 = scmp.le.s32.totalorder 1, %s21
      %p305 = scmp.lt.s32.totalorder %s21, 3
      %p306 = pnand %p304, %p305
      %p307 = pneg %p306
      // Predicated region
      $region53: #{tpu_custom_call.1} parent=5 // pred_check
        _
      $region54: #{tpu_custom_call.1} parent=5 // pred_check_branch
        %309 = sbr.rel (%p306) target = $region56
      $region55: #{tpu_custom_call.1} parent=5 // pred_region
        %s310 = ssub.s32 %s21, 1
        %s311 = sand.u32 %s34, 1
        %s312 = scalar_lea.sflag [#allocation4], %s311
        %s313 = sand.u32 %s34, 1
        %s314 = smul.addr %s313, 16
        %s315 = scalar_lea.vmem [#allocation3], %s314
        // Predicated region
        $region57: #{tpu_custom_call.1} parent=55 // pred_check
          %p316 = pneg %p47
        $region58: #{tpu_custom_call.1} parent=55 // pred_check_branch
          %318 = sbr.rel (%p316) target = $region60
        $region59: #{tpu_custom_call.1} parent=55 // pred_region
          %320 = dma.done %s312, 256
        $region60: #{tpu_custom_call.1} parent=55 // pred_fallthru
          _
        %s321 = sand.u32 %s34, 1
        %s322 = scalar_lea.sflag [#allocation4], %s321
        %s323 = sand.u32 %s34, 1
        %s324 = smul.addr %s323, 16
        %s325 = scalar_lea.vmem [#allocation3], %s324
        %p326 = pneg %p47
        %p327 = pneg %p44
        %p328 = pneg %p68
        %p329 = pneg %p65
        %p330 = pneg %p89
        %p331 = pneg %p86
        %p332 = pneg %p110
        %p333 = pneg %p107
        %p334 = pneg %p131
        %p335 = pneg %p128
        %p336 = pneg %p152
        %p337 = pneg %p149
        %p338 = pneg %p173
        %p339 = pneg %p170
        %p340 = pneg %p194
        %p341 = pneg %p191
        %p342 = pneg %p215
        %p343 = pneg %p212
        %p344 = pneg %p241
        %p345 = pneg %p238
        %s346 = sand.u32 %s228, 1
        %s347 = scalar_lea.sflag [#allocation5], %s346
        %s348 = sand.u32 %s228, 1
        %s349 = smul.addr %s348, 16
        %s350 = scalar_lea.vmem [#allocation6], %s349
        %v351 = vld [vmem:[%s315] sm:$0xff]
        %v352 = vld [vmem:[%s315 + $0x8] sm:$0xff]
        %v353 = vlaneseq
        %v354 = vand.u32 %v353, 127
        %v355 = vadd.s32 %v354, 128
        %v356 = vand.u32 %v354, 15
        %v357 = vand.u32 %v355, 15
        %vm358 = vcmp.ge.s32.totalorder %v356, 1
        %vm359 = vcmp.ge.s32.totalorder %v357, 1
        %vm360 = vcmp.le.s32.totalorder %v356, 14
        %vm361 = vcmp.le.s32.totalorder %v357, 14
        %362 = vst [vmem:[#allocation2] sm:$0xff] 0.0
        %363 = vst [vmem:[#allocation2 + $0x8] sm:$0xff] 0.0
        %364 = vst [vmem:[#allocation2 + $0x10] sm:$0xff] 0.0
        %365 = vst [vmem:[#allocation2 + $0x18] sm:$0xff] 0.0
        %366 = vst [vmem:[#allocation2 + $0x8] sm:$0xff] %v351
        %367 = vst [vmem:[#allocation2 + $0x10] sm:$0xff] %v352
        %v368 = vld [vmem:[#allocation2] sm:$0xff]
        %v369 = vld [vmem:[#allocation2 + $0x8] sm:$0xff]
        %v370 = vld [vmem:[#allocation2 + $0x10] sm:$0xff]
        %v371 = vsel %vm358, 1, 0
        %v372 = vsel %vm359, 1, 0
        %vm373 = vcmp.eq.s32.totalorder %v371, 1
        %vm374 = vcmp.eq.s32.totalorder %v372, 1
        %378 = vrot.lane.b32.xlu0 %v368, 17
        %v379 = vpop.permute.xlu0 %378
        %380 = vrot.lane.b32.xlu0 %v369, 17
        %v381 = vpop.permute.xlu0 %380
        %382 = vrot.lane.b32.xlu0 %v370, 17
        %v383 = vpop.permute.xlu0 %382
        %vm384 = vcmask 138240
        %v385 = vsel %vm384, %v379, %v381
        %v386 = vsel %vm384, %v381, %v383
        %v389 = vsel %vm373, %v385, 0.0
        %v390 = vsel %vm374, %v386, 0.0
        %v391 = vsel %vm360, 1, 0
        %v392 = vsel %vm361, 1, 0
        %vm393 = vcmp.eq.s32.totalorder %v391, 1
        %vm394 = vcmp.eq.s32.totalorder %v392, 1
        %395 = vrot.lane.b32.xlu0 %v368, 15
        %v396 = vpop.permute.xlu0 %395
        %397 = vrot.lane.b32.xlu0 %v369, 15
        %v398 = vpop.permute.xlu0 %397
        %399 = vrot.lane.b32.xlu0 %v370, 15
        %v400 = vpop.permute.xlu0 %399
        %vm401 = vcmask 121856
        %v402 = vsel %vm401, %v396, %v398
        %v403 = vsel %vm401, %v398, %v400
        %v406 = vsel %vm393, %v402, 0.0
        %v407 = vsel %vm394, %v403, 0.0
        %408 = vrot.lane.b32.xlu0 %v368, 1
        %v409 = vpop.permute.xlu0 %408
        %410 = vrot.lane.b32.xlu0 %v369, 1
        %v411 = vpop.permute.xlu0 %410
        %412 = vrot.lane.b32.xlu0 %v370, 1
        %v413 = vpop.permute.xlu0 %412
        %vm414 = vcmask 7168
        %v415 = vsel %vm414, %v409, %v411
        %v416 = vsel %vm414, %v411, %v413
        %v419 = vsel %vm373, %v415, 0.0
        %v420 = vsel %vm374, %v416, 0.0
        %v421 = vld [vmem:[#allocation2 + $0x8] sm:$0xff]
        %v422 = vld [vmem:[#allocation2 + $0x10] sm:$0xff]
        %v423 = vld [vmem:[#allocation2 + $0x18] sm:$0xff]
        %427 = vrot.lane.b32.xlu0 %v421, 127
        %v428 = vpop.permute.xlu0 %427
        %429 = vrot.lane.b32.xlu0 %v422, 127
        %v430 = vpop.permute.xlu0 %429
        %431 = vrot.lane.b32.xlu0 %v423, 127
        %v432 = vpop.permute.xlu0 %431
        %vm433 = vcmask 1039360
        %v434 = vsel %vm433, %v428, %v430
        %v435 = vsel %vm433, %v430, %v432
        %v438 = vsel %vm393, %v434, 0.0
        %v439 = vsel %vm394, %v435, 0.0
        %440 = vrot.lane.b32.xlu0 %v421, 113
        %v441 = vpop.permute.xlu0 %440
        %442 = vrot.lane.b32.xlu0 %v422, 113
        %v443 = vpop.permute.xlu0 %442
        %444 = vrot.lane.b32.xlu0 %v423, 113
        %v445 = vpop.permute.xlu0 %444
        %vm446 = vcmask 924672
        %v447 = vsel %vm446, %v441, %v443
        %v448 = vsel %vm446, %v443, %v445
        %v451 = vsel %vm373, %v447, 0.0
        %v452 = vsel %vm374, %v448, 0.0
        %453 = vrot.lane.b32.xlu0 %v421, 111
        %v454 = vpop.permute.xlu0 %453
        %455 = vrot.lane.b32.xlu0 %v422, 111
        %v456 = vpop.permute.xlu0 %455
        %457 = vrot.lane.b32.xlu0 %v423, 111
        %v458 = vpop.permute.xlu0 %457
        %vm459 = vcmask 908288
        %v460 = vsel %vm459, %v454, %v456
        %v461 = vsel %vm459, %v456, %v458
        %v464 = vsel %vm393, %v460, 0.0
        %v465 = vsel %vm394, %v461, 0.0
        %466 = vrot.lane.b32.xlu0 %v368, 16
        %v467 = vpop.permute.xlu0 %466
        %468 = vrot.lane.b32.xlu0 %v369, 16
        %v469 = vpop.permute.xlu0 %468
        %470 = vrot.lane.b32.xlu0 %v370, 16
        %v471 = vpop.permute.xlu0 %470
        %vm472 = vcmask 130048
        %v473 = vsel %vm472, %v467, %v469
        %v474 = vsel %vm472, %v469, %v471
        %477 = vrot.lane.b32.xlu0 %v421, 112
        %v478 = vpop.permute.xlu0 %477
        %479 = vrot.lane.b32.xlu0 %v422, 112
        %v480 = vpop.permute.xlu0 %479
        %481 = vrot.lane.b32.xlu0 %v423, 112
        %v482 = vpop.permute.xlu0 %481
        %vm483 = vcmask 916480
        %v484 = vsel %vm483, %v478, %v480
        %v485 = vsel %vm483, %v480, %v482
        %v488 = vld [vmem:[%s1] sm:$0xff]
        %v489 = vld [vmem:[%s2] sm:$0xff]
        %491 = vset.pattern.permute.xlu0 0
        %492 = vperm.xlu0 %491, %v489
        %v493 = vpop.permute.xlu0 %492
        %vm495 = vcmask 588800
        %v497 = vsel %vm495, %v488, 0
        %499 = vmatpush.msra.mxu0 0.0
        %500 = vmatpush.msra.mxu0 0.0
        %501 = vmatpush.msra.mxu0 0.0
        %502 = vmatpush.msra.mxu0 0.0
        %503 = vmatpush.msra.mxu0 0.0
        %504 = vmatpush.msra.mxu0 0.0
        %505 = vmatpush.msra.mxu0 0.0
        %506 = vmatpush.msra.mxu0 %v464
        %507 = vmatpush.msra.mxu0 %v484
        %508 = vmatpush.msra.mxu0 %v451
        %509 = vmatpush.msra.mxu0 %v438
        %510 = vmatpush.msra.mxu0 %v369
        %511 = vmatpush.msra.mxu0 %v419
        %512 = vmatpush.msra.mxu0 %v406
        %513 = vmatpush.msra.mxu0 %v473
        %514 = vmatpush.msra.mxu0 %v389
        %515 = vmatmul.f32.gmra.mxu0 %v497
        %v516 = vpop.f32.mrf.mxu0
        %v517 = vadd.f32 %v493, %v516
        %518 = vdwg.mxu0
        %519 = vmatpush.msra.mxu0 0.0
        %520 = vmatpush.msra.mxu0 0.0
        %521 = vmatpush.msra.mxu0 0.0
        %522 = vmatpush.msra.mxu0 0.0
        %523 = vmatpush.msra.mxu0 0.0
        %524 = vmatpush.msra.mxu0 0.0
        %525 = vmatpush.msra.mxu0 0.0
        %526 = vmatpush.msra.mxu0 %v465
        %527 = vmatpush.msra.mxu0 %v485
        %528 = vmatpush.msra.mxu0 %v452
        %529 = vmatpush.msra.mxu0 %v439
        %530 = vmatpush.msra.mxu0 %v370
        %531 = vmatpush.msra.mxu0 %v420
        %532 = vmatpush.msra.mxu0 %v407
        %533 = vmatpush.msra.mxu0 %v474
        %534 = vmatpush.msra.mxu0 %v390
        %535 = vmatmul.f32.gmra.mxu0 %v497
        %v536 = vpop.f32.mrf.mxu0
        %v537 = vadd.f32 %v493, %v536
        %538 = vdwg.mxu0
        %v539 = vmax.f32 %v517, 0.0
        %v540 = vmax.f32 %v537, 0.0
        %541 = vst [vmem:[#allocation2 + $0x8] sm:$0xff] %v539
        %542 = vst [vmem:[#allocation2 + $0x10] sm:$0xff] %v540
        %v543 = vld [vmem:[#allocation2] sm:$0xff]
        %v544 = vld [vmem:[#allocation2 + $0x8] sm:$0xff]
        %v545 = vld [vmem:[#allocation2 + $0x10] sm:$0xff]
        %549 = vrot.lane.b32.xlu0 %v543, 17
        %v550 = vpop.permute.xlu0 %549
        %551 = vrot.lane.b32.xlu0 %v544, 17
        %v552 = vpop.permute.xlu0 %551
        %553 = vrot.lane.b32.xlu0 %v545, 17
        %v554 = vpop.permute.xlu0 %553
        %v555 = vsel %vm384, %v550, %v552
        %v556 = vsel %vm384, %v552, %v554
        %v559 = vsel %vm373, %v555, 0.0
        %v560 = vsel %vm374, %v556, 0.0
        %561 = vrot.lane.b32.xlu0 %v543, 15
        %v562 = vpop.permute.xlu0 %561
        %563 = vrot.lane.b32.xlu0 %v544, 15
        %v564 = vpop.permute.xlu0 %563
        %565 = vrot.lane.b32.xlu0 %v545, 15
        %v566 = vpop.permute.xlu0 %565
        %v567 = vsel %vm401, %v562, %v564
        %v568 = vsel %vm401, %v564, %v566
        %v571 = vsel %vm393, %v567, 0.0
        %v572 = vsel %vm394, %v568, 0.0
        %573 = vrot.lane.b32.xlu0 %v543, 1
        %v574 = vpop.permute.xlu0 %573
        %575 = vrot.lane.b32.xlu0 %v544, 1
        %v576 = vpop.permute.xlu0 %575
        %577 = vrot.lane.b32.xlu0 %v545, 1
        %v578 = vpop.permute.xlu0 %577
        %v579 = vsel %vm414, %v574, %v576
        %v580 = vsel %vm414, %v576, %v578
        %v583 = vsel %vm373, %v579, 0.0
        %v584 = vsel %vm374, %v580, 0.0
        %v585 = vld [vmem:[#allocation2 + $0x8] sm:$0xff]
        %v586 = vld [vmem:[#allocation2 + $0x10] sm:$0xff]
        %v587 = vld [vmem:[#allocation2 + $0x18] sm:$0xff]
        %591 = vrot.lane.b32.xlu0 %v585, 127
        %v592 = vpop.permute.xlu0 %591
        %593 = vrot.lane.b32.xlu0 %v586, 127
        %v594 = vpop.permute.xlu0 %593
        %595 = vrot.lane.b32.xlu0 %v587, 127
        %v596 = vpop.permute.xlu0 %595
        %v597 = vsel %vm433, %v592, %v594
        %v598 = vsel %vm433, %v594, %v596
        %v601 = vsel %vm393, %v597, 0.0
        %v602 = vsel %vm394, %v598, 0.0
        %603 = vrot.lane.b32.xlu0 %v585, 113
        %v604 = vpop.permute.xlu0 %603
        %605 = vrot.lane.b32.xlu0 %v586, 113
        %v606 = vpop.permute.xlu0 %605
        %607 = vrot.lane.b32.xlu0 %v587, 113
        %v608 = vpop.permute.xlu0 %607
        %v609 = vsel %vm446, %v604, %v606
        %v610 = vsel %vm446, %v606, %v608
        %v613 = vsel %vm373, %v609, 0.0
        %v614 = vsel %vm374, %v610, 0.0
        %615 = vrot.lane.b32.xlu0 %v585, 111
        %v616 = vpop.permute.xlu0 %615
        %617 = vrot.lane.b32.xlu0 %v586, 111
        %v618 = vpop.permute.xlu0 %617
        %619 = vrot.lane.b32.xlu0 %v587, 111
        %v620 = vpop.permute.xlu0 %619
        %v621 = vsel %vm459, %v616, %v618
        %v622 = vsel %vm459, %v618, %v620
        %v625 = vsel %vm393, %v621, 0.0
        %v626 = vsel %vm394, %v622, 0.0
        %627 = vrot.lane.b32.xlu0 %v543, 16
        %v628 = vpop.permute.xlu0 %627
        %629 = vrot.lane.b32.xlu0 %v544, 16
        %v630 = vpop.permute.xlu0 %629
        %631 = vrot.lane.b32.xlu0 %v545, 16
        %v632 = vpop.permute.xlu0 %631
        %v633 = vsel %vm472, %v628, %v630
        %v634 = vsel %vm472, %v630, %v632
        %637 = vrot.lane.b32.xlu0 %v585, 112
        %v638 = vpop.permute.xlu0 %637
        %639 = vrot.lane.b32.xlu0 %v586, 112
        %v640 = vpop.permute.xlu0 %639
        %641 = vrot.lane.b32.xlu0 %v587, 112
        %v642 = vpop.permute.xlu0 %641
        %v643 = vsel %vm483, %v638, %v640
        %v644 = vsel %vm483, %v640, %v642
        %v647 = vld [vmem:[%s3] sm:$0xff]
        %v648 = vld [vmem:[%s4] sm:$0xff]
        %650 = vset.pattern.permute.xlu0 0
        %651 = vperm.xlu0 %650, %v648
        %v652 = vpop.permute.xlu0 %651
        %v655 = vsel %vm495, %v647, 0
        %657 = vmatpush.msra.mxu0 0.0
        %658 = vmatpush.msra.mxu0 0.0
        %659 = vmatpush.msra.mxu0 0.0
        %660 = vmatpush.msra.mxu0 0.0
        %661 = vmatpush.msra.mxu0 0.0
        %662 = vmatpush.msra.mxu0 0.0
        %663 = vmatpush.msra.mxu0 0.0
        %664 = vmatpush.msra.mxu0 %v625
        %665 = vmatpush.msra.mxu0 %v643
        %666 = vmatpush.msra.mxu0 %v613
        %667 = vmatpush.msra.mxu0 %v601
        %668 = vmatpush.msra.mxu0 %v544
        %669 = vmatpush.msra.mxu0 %v583
        %670 = vmatpush.msra.mxu0 %v571
        %671 = vmatpush.msra.mxu0 %v633
        %672 = vmatpush.msra.mxu0 %v559
        %673 = vmatmul.f32.gmra.mxu0 %v655
        %v674 = vpop.f32.mrf.mxu0
        %v675 = vadd.f32 %v652, %v674
        %676 = vdwg.mxu0
        %677 = vmatpush.msra.mxu0 0.0
        %678 = vmatpush.msra.mxu0 0.0
        %679 = vmatpush.msra.mxu0 0.0
        %680 = vmatpush.msra.mxu0 0.0
        %681 = vmatpush.msra.mxu0 0.0
        %682 = vmatpush.msra.mxu0 0.0
        %683 = vmatpush.msra.mxu0 0.0
        %684 = vmatpush.msra.mxu0 %v626
        %685 = vmatpush.msra.mxu0 %v644
        %686 = vmatpush.msra.mxu0 %v614
        %687 = vmatpush.msra.mxu0 %v602
        %688 = vmatpush.msra.mxu0 %v545
        %689 = vmatpush.msra.mxu0 %v584
        %690 = vmatpush.msra.mxu0 %v572
        %691 = vmatpush.msra.mxu0 %v634
        %692 = vmatpush.msra.mxu0 %v560
        %693 = vmatmul.f32.gmra.mxu0 %v655
        %v694 = vpop.f32.mrf.mxu0
        %v695 = vadd.f32 %v652, %v694
        %696 = vdwg.mxu0
        %v697 = vadd.f32 %v675, %v695
        %698 = vadd.xlane.f32.xlu0 %v697
        %v699 = vpop.xlane.xlu0 %698
        %v700 = vmul.f32 %v699, 0.00390625
        %v701 = vld [vmem:[%s5] sm:$0x3]
        %v702 = vld [vmem:[%s6] sm:$0x3]
        %vm703 = vcmask 64512
        %v705 = vsel %vm703, %v701, 0
        %707 = vmatpush.msra.mxu0 0.0
        %708 = vmatpush.msra.mxu0 0.0
        %709 = vmatpush.msra.mxu0 0.0
        %710 = vmatpush.msra.mxu0 0.0
        %711 = vmatpush.msra.mxu0 0.0
        %712 = vmatpush.msra.mxu0 0.0
        %713 = vmatpush.msra.mxu0 0.0
        %714 = vmatpush.msra.mxu0 0.0
        %715 = vmatpush.msra.mxu0 0.0
        %716 = vmatpush.msra.mxu0 0.0
        %717 = vmatpush.msra.mxu0 0.0
        %718 = vmatpush.msra.mxu0 0.0
        %719 = vmatpush.msra.mxu0 0.0
        %720 = vmatpush.msra.mxu0 0.0
        %721 = vmatpush.msra.mxu0 0.0
        %722 = vmatpush.msra.mxu0 %v700
        %723 = vmatmul.f32.gmra.mxu0 %v705
        %v724 = vpop.f32.mrf.mxu0
        %v725 = vadd.f32 %v702, %v724
        %726 = vdwg.mxu0
        %v727 = vmax.f32 %v725, 0.0
        %v728 = vld [vmem:[%s7] sm:$0xff]
        %v729 = vld [vmem:[%s8] sm:$0xff]
        %vm730 = vcmask 15360
        %v732 = vsel %vm730, %v728, 0
        %vm734 = vcmask 1041408
        %v736 = vsel %vm734, %v727, 0
        %738 = vmatpush.msra.mxu0 0.0
        %739 = vmatpush.msra.mxu0 0.0
        %740 = vmatpush.msra.mxu0 0.0
        %741 = vmatpush.msra.mxu0 0.0
        %742 = vmatpush.msra.mxu0 0.0
        %743 = vmatpush.msra.mxu0 0.0
        %744 = vmatpush.msra.mxu0 0.0
        %745 = vmatpush.msra.mxu0 0.0
        %746 = vmatpush.msra.mxu0 0.0
        %747 = vmatpush.msra.mxu0 0.0
        %748 = vmatpush.msra.mxu0 0.0
        %749 = vmatpush.msra.mxu0 0.0
        %750 = vmatpush.msra.mxu0 0.0
        %751 = vmatpush.msra.mxu0 0.0
        %752 = vmatpush.msra.mxu0 0.0
        %753 = vmatpush.msra.mxu0 %v736
        %754 = vmatmul.f32.gmra.mxu0 %v732
        %v755 = vpop.f32.mrf.mxu0
        %v756 = vadd.f32 %v729, %v755
        %757 = vdwg.mxu0
        %v758 = vsub.f32 0.0, %v756
        %v759 = vmul.f32 %v758, 1.442695
        %v760 = vpow.pop %v759
        %v761 = vadd.f32 %v760, 1.0
        %v762 = vrcp.pop %v761
        %v763 = vmul.f32 %v761, %v762
        %v764 = vsub.f32 1.0, %v763
        %v765 = vmul.f32 %v762, %v764
        %v766 = vadd.f32 %v762, %v765
        %vm767 = vweird.f32 %v761
        %vm768 = vweird.f32 %v762
        %vm769 = vmor %vm767, %vm768
        %v770 = vsel %vm769, %v762, %v766
        %v771 = vand.u32 2147483647, %v761
        %vm772 = vcmp.eq.f32.partialorder %v771, 8.507059e+37
        %v773 = vand.u32 %v761, 2147483648
        %v774 = vor.u32 1.1754944e-38, %v773
        %v775 = vsel %vm772, %v774, %v770
        %v776 = vmul.f32 1.0, %v775
        %778 = vset.pattern.permute.xlu0 0
        %779 = vperm.xlu0 %778, %v776
        %v780 = vpop.permute.xlu0 %779
        %v782 = vmul.f32 %v675, %v780
        %v783 = vmul.f32 %v695, %v780
        %v784 = vadd.f32 %v782, %v351
        %v785 = vadd.f32 %v783, %v352
        %v786 = vmax.f32 %v784, 0.0
        %v787 = vmax.f32 %v785, 0.0
        %788 = vst [vmem:[%s350] sm:$0xff] %v786
        %789 = vst [vmem:[%s350 + $0x8] sm:$0xff] %v787
        %s790 = sand.u32 %s228, 1
        %s791 = scalar_lea.sflag [#allocation5], %s790
        %s792 = sand.u32 %s228, 1
        %s793 = smul.addr %s792, 16
        %s794 = scalar_lea.vmem [#allocation6], %s793
        // Predicated region
        $region61: #{tpu_custom_call.1} parent=55 // pred_check
          %p795 = pneg %p238
        $region62: #{tpu_custom_call.1} parent=55 // pred_check_branch
          %797 = sbr.rel (%p795) target = $region64
        $region63: #{tpu_custom_call.1} parent=55 // pred_region
          %799 = vsyncadd %s791, 0
          %s800 = smul.addr %s26, 2
          %s801 = smul.addr %s800, 8
          %s802 = scalar_lea.hbm %s9, %s801
          %s804 = sshll.u32 %s794, 4
          %s805 = int_to_ptr.vmem [resolvable:$true] %s804
          %s806 = sshll.u32 %s802, 4
          %s807 = int_to_ptr.hbm [resolvable:$true] %s806
          %809 = dma.vmem_to_hbm [thread:$0]  %s805, 256, %s807, %s791
        $region64: #{tpu_custom_call.1} parent=55 // pred_fallthru
          _
      $region56: #{tpu_custom_call.1} parent=5 // pred_fallthru
        _
      %p810 = scmp.le.s32.totalorder 2, %s21
      // Predicated region
      $region65: #{tpu_custom_call.1} parent=5 // pred_check
        %p811 = pneg %p810
      $region66: #{tpu_custom_call.1} parent=5 // pred_check_branch
        %813 = sbr.rel (%p811) target = $region68
      $region67: #{tpu_custom_call.1} parent=5 // pred_region
        %s814 = ssub.s32 %s21, 2
        // Predicated region
        $region69: #{tpu_custom_call.1} parent=67 // pred_check
          %p815 = pneg %p244
        $region70: #{tpu_custom_call.1} parent=67 // pred_check_branch
          %817 = sbr.rel (%p815) target = $region72
        $region71: #{tpu_custom_call.1} parent=67 // pred_region
          %s818 = sand.u32 %s229, 1
          %s819 = scalar_lea.sflag [#allocation5], %s818
          %s820 = sand.u32 %s229, 1
          %s821 = smul.addr %s820, 16
          %s822 = scalar_lea.vmem [#allocation6], %s821
          %824 = dma.done %s819, 256
        $region72: #{tpu_custom_call.1} parent=67 // pred_fallthru
          _
      $region68: #{tpu_custom_call.1} parent=5 // pred_fallthru
        _
    $region6: #{tpu_custom_call.1} parent=1 // loop_footer
      %s25 = sadd.s32 1, %s21
    $region7: #{tpu_custom_call.1} parent=1 // loop_footer_branch
      %20 = sbr.rel target = $region3
    $region8: #{tpu_custom_call.1} parent=1 // loop_exit
      _
    %825 = vsyncpa [#allocation4], 1
    %s826 = scalar_lea.sflag [#allocation4], 1
    %827 = vsyncpa %s826, 1
    %828 = vsyncpa [#allocation5], 1
    %s829 = scalar_lea.sflag [#allocation5], 1
    %830 = vsyncpa %s829, 1

</llo_original>
